<compile_context>
chip_gen: v7x
topology: tpu7x:2x2x1
jax: 0.10.0
libtpu: 0.0.40
codegen_flags: <defaults>
</compile_context>

<pallas_src>
import functools

import jax
import jax.numpy as jnp
import numpy as np
from jax.experimental import pallas as pl
from jax.experimental.pallas import tpu as pltpu

LANE = 128


def _round_up(x, m):
    return ((x + m - 1) // m) * m


def _sublane_align(dtype):
    # Rows per vreg sublane group: 8 for f32, 16 for bf16, 32 for int8/fp8.
    return 8 * (4 // jnp.dtype(dtype).itemsize)


def _tpu_generation():
    try:
        kind = jax.devices()[0].device_kind.lower()
    except Exception:
        return 6
    for g in (7, 6, 5):
        if f"v{g}" in kind:
            return g
    return 6


def _largest_tile(dim_p, target):
    """Largest multiple of 128 that divides dim_p and is <= target.

    If only a tiny divisor fits but the whole (padded) dim is still modest,
    take the full extent so each grid step keeps a large, lane-dense stream.
    """
    best = LANE
    t = LANE
    while t <= min(dim_p, target):
        if dim_p % t == 0:
            best = t
        t += LANE
    if best < target and dim_p <= 2 * target:
        best = dim_p
    return best


# ----------------------------- kernels --------------------------------------
# Weight is pre-laid-out as (K, N), so the MXU is fed in its native
# [M,K] @ [K,N] orientation (no transposed-RHS contraction per K step).


def _kernel_multik_bias(x_ref, w_ref, b_ref, o_ref, acc_ref):
    k = pl.program_id(2)

    @pl.when(k == 0)
    def _():
        acc_ref[...] = jnp.zeros_like(acc_ref)

    acc_ref[...] += jnp.dot(x_ref[...], w_ref[...],
                            preferred_element_type=jnp.float32)

    @pl.when(k == pl.num_programs(2) - 1)
    def _():
        # Bias add (f32) + cast once per output tile, outside the K loop.
        o_ref[...] = (acc_ref[...] + b_ref[...]).astype(o_ref.dtype)


def _kernel_multik_nobias(x_ref, w_ref, o_ref, acc_ref):
    k = pl.program_id(2)

    @pl.when(k == 0)
    def _():
        acc_ref[...] = jnp.zeros_like(acc_ref)

    acc_ref[...] += jnp.dot(x_ref[...], w_ref[...],
                            preferred_element_type=jnp.float32)

    @pl.when(k == pl.num_programs(2) - 1)
    def _():
        o_ref[...] = acc_ref[...].astype(o_ref.dtype)


def _kernel_singlek_bias(x_ref, w_ref, b_ref, o_ref):
    # Fast path: single reduction step -> no accumulator scratch, no zero-init.
    acc = jnp.dot(x_ref[...], w_ref[...], preferred_element_type=jnp.float32)
    o_ref[...] = (acc + b_ref[...]).astype(o_ref.dtype)


def _kernel_singlek_nobias(x_ref, w_ref, o_ref):
    o_ref[...] = jnp.dot(x_ref[...], w_ref[...],
                         preferred_element_type=jnp.float32).astype(o_ref.dtype)


# ----------------------- one-time parameter prep ----------------------------


def prepare_weight(weight, *, compute_dtype=jnp.bfloat16):
    """One-time weight preprocessing (hoisted out of the per-call path).

    Pads (N, K) to lane multiples, transposes to (K, N) so the kernel runs a
    plain [M,K]@[K,N] dot, and casts to the compute dtype (bf16 by default).
    """
    N, K = weight.shape
    Np, Kp = _round_up(N, LANE), _round_up(K, LANE)
    w = weight
    if (Np, Kp) != (N, K):
        w = jnp.pad(w, ((0, Np - N), (0, Kp - K)))
    w = w.T  # (Kp, Np) -- one HBM pass, amortized over all future calls
    if compute_dtype is not None and w.dtype != compute_dtype:
        w = w.astype(compute_dtype)
    return w


def prepare_bias(bias, out_features):
    """Bias stays f32 regardless of output dtype (precision of the final add)."""
    if bias is None:
        return None
    Np = _round_up(out_features, LANE)
    b = bias.astype(jnp.float32)
    if Np != out_features:
        b = jnp.pad(b, (0, Np - out_features))
    return b.reshape(1, Np)


# ------------------------------- apply --------------------------------------


def _naive_linear_impl(x, w_kn, bias2d, *, out_features, compute_dtype,
                       tm, tn, tk):
    B, K = x.shape
    Kp, Np = w_kn.shape
    assert _round_up(K, LANE) == Kp, "x in_features does not match prepared weight"
    out_dtype = x.dtype
    cdt = compute_dtype if compute_dtype is not None else x.dtype

    gen = _tpu_generation()
    m_align = _sublane_align(cdt)
    Mp = _round_up(B, m_align)

    # Generation-specific tile targets (review: v5e ~512, v6e 512-1024,
    # v7x 640-768 sized for 64 MiB VMEM / 2 TensorCores).
    tgt = {5: 512, 6: 512, 7: 640}[gen]
    tm_target = tm if tm is not None else tgt
    tn_target = tn if tn is not None else tgt
    tk_target = tk if tk is not None else 1024
    # Small-batch / decode-like shapes are weight-bandwidth bound: stream big
    # N/K tiles so each grid step moves several MiB of weight and the
    # ~0.35 us/step fixed cost is amortized.
    if Mp <= 64:
        if tn is None:
            tn_target = max(tn_target, 512)
        if tk is None:
            tk_target = max(tk_target, 2048)

    tm_sel = min(tm_target, Mp)
    tn_sel = tn if tn is not None else _largest_tile(Np, tn_target)
    tk_sel = tk if tk is not None else _largest_tile(Kp, tk_target)
    assert Np % tn_sel == 0 and Kp % tk_sel == 0, \
        "tile override must divide the 128-padded dimension"
    Mp = _round_up(Mp, tm_sel)

    # v7x: the two TensorCores split the "parallel" axes; make sure there are
    # at least 2 output tiles, otherwise one core idles.
    if gen >= 7 and (Mp // tm_sel) * (Np // tn_sel) < 2:
        if tn_sel % (2 * LANE) == 0:
            tn_sel //= 2
        elif tm_sel % (2 * m_align) == 0:
            tm_sel //= 2
        # else: problem is genuinely tiny; a single tile is fine.

    # Pad / cast activations (cheap, per-call; weight was prepped once).
    xp = x
    if (Mp, Kp) != (B, K):
        xp = jnp.pad(xp, ((0, Mp - B), (0, Kp - K)))
    if compute_dtype is not None and xp.dtype != compute_dtype:
        xp = xp.astype(compute_dtype)

    n_k = Kp // tk_sel
    has_bias = bias2d is not None
    # 48 MiB ceiling on v7x (64 MiB physical VMEM); the 128 MiB parts get more
    # headroom so double-buffering of the larger tiles is never shrunk.
    vmem_cap = (48 if gen >= 7 else 96) * 1024 * 1024

    if n_k == 1:
        grid = (Mp // tm_sel, Np // tn_sel)
        x_spec = pl.BlockSpec((tm_sel, tk_sel), lambda i, j: (i, 0))
        # NOTE(review, v7x): optionally pipeline_mode=pl.Buffered(3) here when
        # weight-stream bound; left at the default depth to keep VMEM headroom.
        w_spec = pl.BlockSpec((tk_sel, tn_sel), lambda i, j: (0, j))
        b_spec = pl.BlockSpec((1, tn_sel), lambda i, j: (0, j))
        o_spec = pl.BlockSpec((tm_sel, tn_sel), lambda i, j: (i, j))
        scratch = []
        dims = ("parallel", "parallel")
        kernel = _kernel_singlek_bias if has_bias else _kernel_singlek_nobias
    else:
        grid = (Mp // tm_sel, Np // tn_sel, n_k)
        x_spec = pl.BlockSpec((tm_sel, tk_sel), lambda i, j, k: (i, k))
        w_spec = pl.BlockSpec((tk_sel, tn_sel), lambda i, j, k: (k, j))
        b_spec = pl.BlockSpec((1, tn_sel), lambda i, j, k: (0, j))
        o_spec = pl.BlockSpec((tm_sel, tn_sel), lambda i, j, k: (i, j))
        scratch = [pltpu.VMEM((tm_sel, tn_sel), jnp.float32)]
        dims = ("parallel", "parallel", "arbitrary")
        kernel = _kernel_multik_bias if has_bias else _kernel_multik_nobias

    in_specs = [x_spec, w_spec] + ([b_spec] if has_bias else [])
    operands = (xp, w_kn) + ((bias2d,) if has_bias else ())

    out = pl.pallas_call(
        kernel,
        out_shape=jax.ShapeDtypeStruct((Mp, Np), out_dtype),
        grid_spec=pltpu.PrefetchScalarGridSpec(
            num_scalar_prefetch=0,
            grid=grid,
            in_specs=in_specs,
            out_specs=o_spec,
            scratch_shapes=scratch,
        ),
        compiler_params=pltpu.CompilerParams(
            dimension_semantics=dims,
            vmem_limit_bytes=vmem_cap,
        ),
    )(*operands)

    if (Mp, Np) != (B, out_features):
        out = out[:B, :out_features]
    return out


naive_linear_prepared = jax.jit(
    _naive_linear_impl,
    static_argnames=("out_features", "compute_dtype", "tm", "tn", "tk"),
)


def naive_linear(x, weight, bias=None, *, compute_dtype=jnp.bfloat16,
                 tm=None, tn=None, tk=None):
    """Convenience path: preprocesses weight/bias on every call.

    For repeated use, prefer `NaiveLinear` / `prepare_weight` + `prepare_bias`
    + `naive_linear_prepared` so the weight pad / (K,N) re-layout / cast is
    done once instead of per call.
    `compute_dtype=jnp.bfloat16` (default) feeds the MXU natively with f32
    accumulation; pass `compute_dtype=None` for exact f32 module numerics.
    """
    N = weight.shape[0]
    w_kn = prepare_weight(weight, compute_dtype=compute_dtype)
    b2 = prepare_bias(bias, N)
    return naive_linear_prepared(x, w_kn, b2, out_features=N,
                                 compute_dtype=compute_dtype,
                                 tm=tm, tn=tn, tk=tk)


class NaiveLinear:
    """JAX mirror of the PyTorch NaiveLinear forward (y = x @ W.T + b).

    Weight preprocessing is hoisted to construction time (done once).
    """
    # TODO(synk): backward (NaiveMatmulFunction.backward) not implemented -- forward only.

    def __init__(self, weight, bias=None, *, compute_dtype=jnp.bfloat16):
        self.out_features, self.in_features = weight.shape
        self.compute_dtype = compute_dtype
        self._w_kn = prepare_weight(weight, compute_dtype=compute_dtype)
        self._bias2d = prepare_bias(bias, self.out_features)

    def __call__(self, x, *, tm=None, tn=None, tk=None):
        return naive_linear_prepared(
            x, self._w_kn, self._bias2d,
            out_features=self.out_features,
            compute_dtype=self.compute_dtype, tm=tm, tn=tn, tk=tk)


if __name__ == "__main__":
    key = jax.random.PRNGKey(0)
    kx, kw, kb = jax.random.split(key, 3)

    batch, in_features, out_features = 8, 64, 128
    x = jax.random.normal(kx, (batch, in_features), dtype=jnp.float32)
    weight = jax.random.normal(kw, (out_features, in_features), dtype=jnp.float32)
    bias = jax.random.normal(kb, (out_features,), dtype=jnp.float32)

    np_x, np_w, np_b = map(np.asarray, (x, weight, bias))

    # 1) Default bf16 compute path (f32 accumulate), preprocessing hoisted.
    layer = NaiveLinear(weight, bias)           # weight prepped once here
    y = layer(x)
    jax.block_until_ready(y)
    x_r = np.asarray(x.astype(jnp.bfloat16).astype(jnp.float32))
    w_r = np.asarray(weight.astype(jnp.bfloat16).astype(jnp.float32))
    ref_bf = x_r @ w_r.T + np_b
    assert y.shape == (batch, out_features)
    assert np.allclose(np.asarray(y), ref_bf, atol=1e-2, rtol=1e-2)

    # 2) Exact f32 path (matches the module's matmul numerics), bias=False path.
    y32 = naive_linear(x, weight, None, compute_dtype=None)
    jax.block_until_ready(y32)
    assert np.allclose(np.asarray(y32), np_x @ np_w.T, atol=1e-2, rtol=1e-2)

    # 3) Multi-K reduction grid (forced small tk), f32, with bias.
    in2 = 256
    x2 = jax.random.normal(kx, (batch, in2), dtype=jnp.float32)
    w2 = jax.random.normal(kw, (out_features, in2), dtype=jnp.float32)
    y2 = naive_linear(x2, w2, bias, compute_dtype=None, tk=128)
    jax.block_until_ready(y2)
    ref2 = np.asarray(x2) @ np.asarray(w2).T + np_b
    assert np.allclose(np.asarray(y2), ref2, atol=1e-2, rtol=1e-2)

    # 4) Multi-K reduction grid without bias (covers the remaining kernel variant).
    y3 = naive_linear(x2, w2, None, compute_dtype=None, tk=128)
    jax.block_until_ready(y3)
    assert np.allclose(np.asarray(y3), np.asarray(x2) @ np.asarray(w2).T,
                       atol=1e-2, rtol=1e-2)

    print("KERNEL_OK")
</pallas_src>

<mosaic_0001>
module attributes {stable_mosaic.version = 11 : i64} {
  func.func @_kernel_singlek_bias(%arg0: i32, %arg1: i32, %arg2: memref<16x128xbf16, #tpu.memory_space<vmem>>, %arg3: memref<128x128xbf16, #tpu.memory_space<vmem>>, %arg4: memref<1x128xf32, #tpu.memory_space<vmem>>, %arg5: memref<16x128xf32, #tpu.memory_space<vmem>>) attributes {dimension_semantics = [#tpu.dimension_semantics<parallel>, #tpu.dimension_semantics<parallel>], iteration_bounds = array<i64: 1, 1>, scalar_prefetch = 0 : i64, scratch_operands = 0 : i64, tpu.core_type = #tpu.core_type<tc>, window_params = [{transform_indices = @transform_0, window_bounds = array<i64: 16, 128>}, {transform_indices = @transform_1, window_bounds = array<i64: 128, 128>}, {transform_indices = @transform_2, window_bounds = array<i64: 1, 128>}, {transform_indices = @transform_3, window_bounds = array<i64: 16, 128>}]} {
    %c0 = arith.constant 0 : index
    %c0_0 = arith.constant 0 : index
    %0 = vector.load %arg2[%c0, %c0_0] : memref<16x128xbf16, #tpu.memory_space<vmem>>, vector<16x128xbf16>
    %c0_1 = arith.constant 0 : index
    %c0_2 = arith.constant 0 : index
    %1 = vector.load %arg3[%c0_1, %c0_2] : memref<128x128xbf16, #tpu.memory_space<vmem>>, vector<128x128xbf16>
    %cst = arith.constant dense<0.000000e+00> : vector<16x128xf32>
    %2 = tpu.matmul %0, %1, %cst {dimension_numbers = #tpu.dot_dimension_numbers<[1], [0], [0], [1], [0, 0, 1, 1], [], []>} : vector<16x128xbf16>, vector<128x128xbf16>, vector<16x128xf32> -> vector<16x128xf32>
    %c0_3 = arith.constant 0 : index
    %c0_4 = arith.constant 0 : index
    %3 = vector.load %arg4[%c0_3, %c0_4] : memref<1x128xf32, #tpu.memory_space<vmem>>, vector<1x128xf32>
    %4 = vector.broadcast %3 : vector<1x128xf32> to vector<16x128xf32>
    %5 = arith.addf %2, %4 : vector<16x128xf32>
    %c0_5 = arith.constant 0 : index
    %c0_6 = arith.constant 0 : index
    %6 = vector.load %arg5[%c0_5, %c0_6] : memref<16x128xf32, #tpu.memory_space<vmem>>, vector<16x128xf32>
    tpu.vector_store %arg5[%c0_5, %c0_6], %5 {strides = array<i32>} : memref<16x128xf32, #tpu.memory_space<vmem>>, vector<16x128xf32>,
    return
  }
  func.func @transform_0(%arg0: i32, %arg1: i32) -> (i32, i32) {
    %c0_i32 = arith.constant 0 : i32
    %c0_i32_0 = arith.constant 0 : i32
    return %arg0, %c0_i32 : i32, i32
  }
  func.func @transform_1(%arg0: i32, %arg1: i32) -> (i32, i32) {
    %c0_i32 = arith.constant 0 : i32
    %c0_i32_0 = arith.constant 0 : i32
    return %c0_i32, %arg1 : i32, i32
  }
  func.func @transform_2(%arg0: i32, %arg1: i32) -> (i32, i32) {
    %c0_i32 = arith.constant 0 : i32
    %c0_i32_0 = arith.constant 0 : i32
    return %c0_i32, %arg1 : i32, i32
  }
  func.func @transform_3(%arg0: i32, %arg1: i32) -> (i32, i32) {
    %c0_i32 = arith.constant 0 : i32
    return %arg0, %arg1 : i32, i32
  }
}

</mosaic_0001>

<llo_original>
// kernel: _naive_linear_impl.1
$region0: #{_naive_linear_impl.1}
  #allocation0 [shape = 'u32[]', space=smem, size = 0x4, offset = 0x4, fixed_abs, tag = 'smem constant byte address 0x4 - core index']
  #allocation1 [shape = 'u32[144,128]{1,0:T(1,128)}', space=vmem, size = 0x12000, scoped, tag = 'internal scratch']
  %s0 = inlined_call_operand.hbm [shape: bf16[16,128], index: 0, kind: input, shape index: {}]
  %s1 = inlined_call_operand.hbm [shape: bf16[128,128], index: 1, kind: input, shape index: {}]
  %s2 = inlined_call_operand.hbm [shape: f32[1,128], index: 2, kind: input, shape index: {}]
  %s3 = inlined_call_operand.hbm [shape: f32[16,128], index: 3, kind: output, shape index: {}]
  %s4 = sld [smem:[#allocation0]]
  $region34: #{_naive_linear_impl.1} parent=0
    _
  %s6 = ssub.s32 1, %s4
  %s7 = scalar_select 0, %s6, %s4
  $region1: #{_naive_linear_impl.1} parent=0
    #allocation2 [shape = 'u8[4096]{0}', space=vmem, size = 0x1000, scoped, tag = 'input window, operand 0, single buffered']
    #allocation3 [shape = 's32[1]{0}', space=sflag, size = 0x4, scoped, tag = 'scoped memory for _naive_linear_impl.1']
    #allocation4 [shape = 's32[1]{0}', space=sflag, size = 0x4, scoped, tag = 'scoped memory for _naive_linear_impl.1']
    #allocation5 [shape = 'u8[32768]{0}', space=vmem, size = 0x8000, scoped, tag = 'input window, operand 1, single buffered']
    #allocation6 [shape = 's32[1]{0}', space=sflag, size = 0x4, scoped, tag = 'scoped memory for _naive_linear_impl.1']
    #allocation7 [shape = 'u8[512]{0}', space=vmem, size = 0x400, scoped, tag = 'input window, operand 2, single buffered']
    #allocation8 [shape = 'u8[8192]{0}', space=vmem, size = 0x2000, scoped, tag = 'output window, operand 0, single buffered']
    %8 = vsyncpa [#allocation3], 0
    %9 = vsyncpa [#allocation6], 0
    %10 = vsyncpa [#allocation4], 0
    // Predicated region
    $region2: #{_naive_linear_impl.1} parent=1 // pred_check
      _
    $region3: #{_naive_linear_impl.1} parent=1 // pred_check_branch
      %12 = sbr.rel (0) target = $region5
    $region4: #{_naive_linear_impl.1} parent=1 // pred_region
      %s14 = ssub.s32 128, 128
      %15 = vsyncadd [#allocation3], %s14
      %s16 = sshll.u32 [#allocation2], 4
      %s17 = int_to_ptr.vmem [resolvable:$true] %s16
      %22 = dma.hbm_to_vmem [thread:$0]  %s0, 128, %s17, [#allocation3], 64, 64, 4
    $region5: #{_naive_linear_impl.1} parent=1 // pred_fallthru
      _
    // Predicated region
    $region6: #{_naive_linear_impl.1} parent=1 // pred_check
      _
    $region7: #{_naive_linear_impl.1} parent=1 // pred_check_branch
      %24 = sbr.rel (0) target = $region9
    $region8: #{_naive_linear_impl.1} parent=1 // pred_region
      %s26 = ssub.s32 1024, 1024
      %27 = vsyncadd [#allocation6], %s26
      %s28 = sshll.u32 [#allocation5], 4
      %s29 = int_to_ptr.vmem [resolvable:$true] %s28
      %34 = dma.hbm_to_vmem [thread:$0]  %s1, 1024, %s29, [#allocation6], 64, 64, 4
    $region9: #{_naive_linear_impl.1} parent=1 // pred_fallthru
      _
    // Predicated region
    $region10: #{_naive_linear_impl.1} parent=1 // pred_check
      _
    $region11: #{_naive_linear_impl.1} parent=1 // pred_check_branch
      %36 = sbr.rel (0) target = $region13
    $region12: #{_naive_linear_impl.1} parent=1 // pred_region
      %s38 = ssub.s32 16, 16
      %39 = vsyncadd [#allocation6], %s38
      %s41 = sshll.u32 [#allocation7], 4
      %s42 = int_to_ptr.vmem [resolvable:$true] %s41
      %44 = dma.hbm_to_vmem [thread:$0]  %s2, 16, %s42, [#allocation6]
    $region13: #{_naive_linear_impl.1} parent=1 // pred_fallthru
      _
    // Predicated region
    $region14: #{_naive_linear_impl.1} parent=1 // pred_check
      _
    $region15: #{_naive_linear_impl.1} parent=1 // pred_check_branch
      %46 = sbr.rel (0) target = $region17
    $region16: #{_naive_linear_impl.1} parent=1 // pred_region
      %47 = dma.done [#allocation3], 128
    $region17: #{_naive_linear_impl.1} parent=1 // pred_fallthru
      _
    // Predicated region
    $region18: #{_naive_linear_impl.1} parent=1 // pred_check
      _
    $region19: #{_naive_linear_impl.1} parent=1 // pred_check_branch
      %49 = sbr.rel (0) target = $region21
    $region20: #{_naive_linear_impl.1} parent=1 // pred_region
      %50 = dma.done [#allocation6], 1024
    $region21: #{_naive_linear_impl.1} parent=1 // pred_fallthru
      _
    // Predicated region
    $region22: #{_naive_linear_impl.1} parent=1 // pred_check
      _
    $region23: #{_naive_linear_impl.1} parent=1 // pred_check_branch
      %52 = sbr.rel (0) target = $region25
    $region24: #{_naive_linear_impl.1} parent=1 // pred_region
      %53 = dma.done [#allocation6], 16
    $region25: #{_naive_linear_impl.1} parent=1 // pred_fallthru
      _
    %v55 = vld [vmem:[#allocation2] sm:$0xf]
    %v56 = vld [vmem:[#allocation2 + $0x4] sm:$0xf]
    %v57 = vld [vmem:[#allocation5] sm:$0xf]
    %v58 = vld [vmem:[#allocation5 + $0x4] sm:$0xf]
    %v59 = vld [vmem:[#allocation5 + $0x8] sm:$0xf]
    %v60 = vld [vmem:[#allocation5 + $0xc] sm:$0xf]
    %v61 = vld [vmem:[#allocation5 + $0x10] sm:$0xf]
    %v62 = vld [vmem:[#allocation5 + $0x14] sm:$0xf]
    %v63 = vld [vmem:[#allocation5 + $0x18] sm:$0xf]
    %v64 = vld [vmem:[#allocation5 + $0x1c] sm:$0xf]
    %v65 = vld [vmem:[#allocation5 + $0x20] sm:$0xf]
    %v66 = vld [vmem:[#allocation5 + $0x24] sm:$0xf]
    %v67 = vld [vmem:[#allocation5 + $0x28] sm:$0xf]
    %v68 = vld [vmem:[#allocation5 + $0x2c] sm:$0xf]
    %v69 = vld [vmem:[#allocation5 + $0x30] sm:$0xf]
    %v70 = vld [vmem:[#allocation5 + $0x34] sm:$0xf]
    %v71 = vld [vmem:[#allocation5 + $0x38] sm:$0xf]
    %v72 = vld [vmem:[#allocation5 + $0x3c] sm:$0xf]
    %v73 = vld [vmem:[#allocation7] sm:$0x1]
    %v75 = vlaneseq
    %v76 = vshrl.u32 %v75, 7
    %v77 = vsub.s32 0, %v76
    %v78 = vrot.slane %v73, %v77
    %v82 = vunpack.c.l.b16 %v55
    %v83 = vunpack.c.l.b16 %v56
    %v84 = vpack.c.b16 %v83, %v82
    %v102 = vunpack.c.l.b16 %v57
    %v103 = vunpack.c.l.b16 %v58
    %v104 = vunpack.c.l.b16 %v59
    %v105 = vunpack.c.l.b16 %v60
    %v106 = vunpack.c.l.b16 %v61
    %v107 = vunpack.c.l.b16 %v62
    %v108 = vunpack.c.l.b16 %v63
    %v109 = vunpack.c.l.b16 %v64
    %v110 = vunpack.c.l.b16 %v65
    %v111 = vunpack.c.l.b16 %v66
    %v112 = vunpack.c.l.b16 %v67
    %v113 = vunpack.c.l.b16 %v68
    %v114 = vunpack.c.l.b16 %v69
    %v115 = vunpack.c.l.b16 %v70
    %v116 = vunpack.c.l.b16 %v71
    %v117 = vunpack.c.l.b16 %v72
    %v118 = vpack.c.b16 %v103, %v102
    %v119 = vpack.c.b16 %v105, %v104
    %v120 = vpack.c.b16 %v107, %v106
    %v121 = vpack.c.b16 %v109, %v108
    %v122 = vpack.c.b16 %v111, %v110
    %v123 = vpack.c.b16 %v113, %v112
    %v124 = vpack.c.b16 %v115, %v114
    %v125 = vpack.c.b16 %v117, %v116
    %134 = vmatprep.subr.bf16.mxu0 0
    %135 = vmatpush1.bf16.msra.mxu0 %v118
    %136 = vmatprep.subr.bf16.mxu0 0
    %137 = vmatpush1.bf16.msra.mxu0 %v119
    %138 = vmatprep.subr.bf16.mxu0 0
    %139 = vmatpush1.bf16.msra.mxu0 %v120
    %140 = vmatprep.subr.bf16.mxu0 0
    %141 = vmatpush1.bf16.msra.mxu0 %v121
    %142 = vmatprep.subr.bf16.mxu0 0
    %143 = vmatpush1.bf16.msra.mxu0 %v122
    %144 = vmatprep.subr.bf16.mxu0 0
    %145 = vmatpush1.bf16.msra.mxu0 %v123
    %146 = vmatprep.subr.bf16.mxu0 0
    %147 = vmatpush1.bf16.msra.mxu0 %v124
    %148 = vmatprep.subr.bf16.mxu0 0
    %149 = vmatpush1.bf16.msra.mxu0 %v125
    %150 = vmatprep.subr.bf16.mxu0 0
    %151 = vmatpush1.bf16.msra.mxu0 0
    %152 = vmatprep.subr.bf16.mxu0 0
    %153 = vmatpush1.bf16.msra.mxu0 0
    %154 = vmatprep.subr.bf16.mxu0 0
    %155 = vmatpush1.bf16.msra.mxu0 0
    %156 = vmatprep.subr.bf16.mxu0 0
    %157 = vmatpush1.bf16.msra.mxu0 0
    %158 = vmatprep.subr.bf16.mxu0 0
    %159 = vmatpush1.bf16.msra.mxu0 0
    %160 = vmatprep.subr.bf16.mxu0 0
    %161 = vmatpush1.bf16.msra.mxu0 0
    %162 = vmatprep.subr.bf16.mxu0 0
    %163 = vmatpush1.bf16.msra.mxu0 0
    %164 = vmatprep.subr.bf16.mxu0 0
    %165 = vmatpush1.bf16.msra.mxu0 0
    %166 = vmatprep.mubr.bf16.mxu0 0
    %167 = vmatmul.mubr.bf16.gmra.mrb[0].mxu0 %v84
    %v168 = vpop.f32.mrb[0].mxu0
    %v169 = vadd.f32 %v78, %v168
    %v170 = vpop.f32.mrb[0].mxu0
    %v171 = vpop.f32.mrb[0].mxu0
    %v172 = vadd.f32 %v78, %v171
    %v173 = vpop.f32.mrb[0].mxu0
    %174 = vdwg.mxu0
    %175 = vst [vmem:[#allocation8] sm:$0xff] %v169
    %176 = vst [vmem:[#allocation8 + $0x8] sm:$0xff] %v172
    // Predicated region
    $region26: #{_naive_linear_impl.1} parent=1 // pred_check
      _
    $region27: #{_naive_linear_impl.1} parent=1 // pred_check_branch
      %178 = sbr.rel (0) target = $region29
    $region28: #{_naive_linear_impl.1} parent=1 // pred_region
      %s180 = ssub.s32 256, 256
      %181 = vsyncadd [#allocation4], %s180
      %s182 = sshll.u32 [#allocation8], 4
      %s183 = int_to_ptr.vmem [resolvable:$true] %s182
      %188 = dma.vmem_to_hbm [thread:$0]  %s183, 256, %s3, [#allocation4], 128, 128, 8
    $region29: #{_naive_linear_impl.1} parent=1 // pred_fallthru
      _
    // Predicated region
    $region30: #{_naive_linear_impl.1} parent=1 // pred_check
      _
    $region31: #{_naive_linear_impl.1} parent=1 // pred_check_branch
      %190 = sbr.rel (0) target = $region33
    $region32: #{_naive_linear_impl.1} parent=1 // pred_region
      %191 = dma.done [#allocation4], 256
    $region33: #{_naive_linear_impl.1} parent=1 // pred_fallthru
      _
    %192 = vsyncpa [#allocation3], 1
    %193 = vsyncpa [#allocation6], 1
    %194 = vsyncpa [#allocation4], 1

</llo_original>
